<compile_context>
chip_gen: v7x
topology: tpu7x:2x2x1
jax: 0.10.0
libtpu: 0.0.40
codegen_flags: <defaults>
</compile_context>

<pallas_src>
import functools

import jax
import jax.numpy as jnp
from jax.experimental import pallas as pl
from jax.experimental.pallas import tpu as pltpu

_EPS = 1e-12


def _round_up(x, m):
    return (x + m - 1) // m * m


def _pick_tile(dim, max_tile, align):
    """Pick (tile, padded_dim): tile is a multiple of `align`, <= max_tile
    (or the align-rounded dim if that is smaller), chosen to minimize padding
    waste; among equal padding the largest tile wins (fewer grid steps)."""
    max_tile = max(max_tile, align)
    d = _round_up(dim, align)
    if d <= max_tile:
        return d, d
    best_t, best_p = None, None
    t = (max_tile // align) * align
    while t >= align:
        p = _round_up(d, t)
        if best_p is None or p < best_p:
            best_p, best_t = p, t
        t -= align
    return best_t, best_p


# ---------------------------------------------------------------------------
# Fused kernel: scores = row_inv * (x @ w) * rsqrt(max(colsum(w^2), eps^2))
#   row_inv already contains the learned scale (computed f32-exact in wrapper).
# Grid: (B tiles, C tiles, F tiles); reduction axis (F) last, "arbitrary".
# The f32 output block is resident across k and doubles as the accumulator.
# ---------------------------------------------------------------------------
def _cosine_scores_kernel(rinv_ref, x_ref, w_ref, o_ref, colsq_ref):
    k = pl.program_id(2)

    @pl.when(k == 0)
    def _():
        o_ref[...] = jnp.zeros_like(o_ref)
        colsq_ref[...] = jnp.zeros_like(colsq_ref)

    w = w_ref[...]                                            # bf16 (tk, tn)

    # Column sum-of-squares (f32) of the streamed weight tile; VPU mul + XLU
    # sublane-reduce, hidden under the MXU matmul / HBM stream.
    wf = w.astype(jnp.float32)
    colsq_ref[...] += jnp.sum(wf * wf, axis=0, keepdims=True)  # (1, tn)

    # bf16 MXU matmul, f32 accumulation directly into the resident output.
    o_ref[...] += jnp.dot(x_ref[...], w, preferred_element_type=jnp.float32)

    @pl.when(k == pl.num_programs(2) - 1)
    def _():
        # rsqrt(max(sumsq, eps^2)) == 1 / max(norm, eps)  (matches F.normalize)
        col_inv = jax.lax.rsqrt(jnp.maximum(colsq_ref[...], _EPS * _EPS))
        o_ref[...] = o_ref[...] * rinv_ref[...] * col_inv


@functools.partial(jax.jit, static_argnames=("tile_m", "tile_n", "tile_k"))
def cosine_classifier(x, weight, scale, *, tile_m=512, tile_n=512, tile_k=1024):
    """x: (B, n_feat) f32, weight: (n_feat, C) f32, scale: (1,) f32 -> (B, C) f32."""
    B, F = x.shape
    Fw, C = weight.shape
    assert F == Fw, "feature dims of x and weight must match"
    assert scale.shape == (1,)

    # Tile selection: lane-dense (multiples of 128 on C/F, 8 on B), minimal
    # padding waste, zero padding sliced off at the end.
    tm, B_pad = _pick_tile(B, tile_m, 8)
    tn, C_pad = _pick_tile(C, tile_n, 128)
    tk, F_pad = _pick_tile(F, tile_k, 128)

    n_i, n_j = B_pad // tm, C_pad // tn
    # v7x megacore: make sure the parallel (i, j) grid has >= 2 blocks when
    # possible so both TensorCores get work (split the class axis).
    if n_i * n_j == 1 and C_pad >= 2 * 128:
        t = (C_pad // 2) // 128 * 128
        while t >= 128:
            if C_pad % t == 0:
                tn = t
                n_j = C_pad // tn
                break
            t -= 128
    n_k = F_pad // tk

    # Per-row inverse L2 norm of x, computed f32-exact on the tiny (B, F)
    # input, with the learned scale folded in (no separate (B, C) scale pass).
    xf = x.astype(jnp.float32)
    row_sq = jnp.sum(xf * xf, axis=-1, keepdims=True)                 # (B, 1)
    row_inv = scale[0] * jax.lax.rsqrt(jnp.maximum(row_sq, _EPS * _EPS))
    row_inv = row_inv.astype(jnp.float32)

    # bf16 operand streaming: cast first, then pad the bf16 arrays (fused by
    # XLA); skip the pad entirely when shapes are already aligned.
    x_bf = x.astype(jnp.bfloat16)
    w_bf = weight.astype(jnp.bfloat16)
    if (B_pad, F_pad) != (B, F):
        x_bf = jnp.pad(x_bf, ((0, B_pad - B), (0, F_pad - F)))
    if (F_pad, C_pad) != (F, C):
        w_bf = jnp.pad(w_bf, ((0, F_pad - F), (0, C_pad - C)))
    if B_pad != B:
        row_inv = jnp.pad(row_inv, ((0, B_pad - B), (0, 0)))

    # VMEM budget: above v5e's 16 MiB default scoped limit, below v7x's
    # 64 MiB physical capacity; default tiles need ~6 MiB incl. double buffers.
    vmem_limit = 48 * 1024 * 1024

    out_p = pl.pallas_call(
        _cosine_scores_kernel,
        out_shape=jax.ShapeDtypeStruct((B_pad, C_pad), jnp.float32),
        grid_spec=pltpu.PrefetchScalarGridSpec(
            num_scalar_prefetch=0,
            grid=(n_i, n_j, n_k),
            in_specs=[
                pl.BlockSpec((tm, 1), lambda i, j, k: (i, 0)),    # row_inv
                pl.BlockSpec((tm, tk), lambda i, j, k: (i, k)),   # x (bf16)
                pl.BlockSpec((tk, tn), lambda i, j, k: (k, j)),   # w (bf16)
            ],
            out_specs=pl.BlockSpec((tm, tn), lambda i, j, k: (i, j)),
            scratch_shapes=[
                pltpu.VMEM((1, tn), jnp.float32),   # colsum(w^2) accumulator
            ],
        ),
        compiler_params=pltpu.CompilerParams(
            dimension_semantics=("parallel", "parallel", "arbitrary"),
            vmem_limit_bytes=vmem_limit),
    )(row_inv, x_bf, w_bf)

    return out_p[:B, :C]


def cosine_classifier_ref(x, weight, scale):
    x_n = x / jnp.maximum(jnp.linalg.norm(x, axis=-1, keepdims=True), _EPS)
    w_n = weight / jnp.maximum(jnp.linalg.norm(weight, axis=0, keepdims=True), _EPS)
    return scale[0] * (x_n @ w_n)


if __name__ == "__main__":
    # Small shapes consistent with the module: batch=8, n_feat=32, classes=16.
    B, n_feat, num_classes = 8, 32, 16

    key = jax.random.PRNGKey(0)
    kx, kw = jax.random.split(key)

    x = jax.random.normal(kx, (B, n_feat), dtype=jnp.float32)
    # weight ~ N(0, sqrt(2/num_classes)) as in the PyTorch __init__.
    weight = jax.random.normal(kw, (n_feat, num_classes), dtype=jnp.float32) \
        * jnp.sqrt(2.0 / num_classes)
    scale = jnp.array([10.0], dtype=jnp.float32)   # learned scalar, init 10.0

    out = cosine_classifier(x, weight, scale)
    jax.block_until_ready(out)

    ref = cosine_classifier_ref(x, weight, scale)
    assert out.shape == (B, num_classes)
    # bf16 operand streaming (f32 accumulate / f32 row norms) -> looser
    # tolerance than a pure-f32 path.
    assert jnp.allclose(out, ref, atol=5e-2, rtol=5e-2), (
        f"mismatch vs reference: max |diff| = {jnp.max(jnp.abs(out - ref))}")

    print("KERNEL_OK")
</pallas_src>

<mosaic_0001>
module attributes {stable_mosaic.version = 11 : i64} {
  func.func @_cosine_scores_kernel(%arg0: i32, %arg1: i32, %arg2: i32, %arg3: memref<8x1xf32, #tpu.memory_space<vmem>>, %arg4: memref<8x128xbf16, #tpu.memory_space<vmem>>, %arg5: memref<128x128xbf16, #tpu.memory_space<vmem>>, %arg6: memref<8x128xf32, #tpu.memory_space<vmem>>, %arg7: memref<1x128xf32, #tpu.memory_space<vmem>>) attributes {dimension_semantics = [#tpu.dimension_semantics<parallel>, #tpu.dimension_semantics<parallel>, #tpu.dimension_semantics<arbitrary>], iteration_bounds = array<i64: 1, 1, 1>, scalar_prefetch = 0 : i64, scratch_operands = 1 : i64, tpu.core_type = #tpu.core_type<tc>, window_params = [{transform_indices = @transform_0, window_bounds = array<i64: 8, 1>}, {transform_indices = @transform_1, window_bounds = array<i64: 8, 128>}, {transform_indices = @transform_2, window_bounds = array<i64: 128, 128>}, {transform_indices = @transform_3, window_bounds = array<i64: 8, 128>}]} {
    %c0_i32 = arith.constant 0 : i32
    %0 = arith.cmpi eq, %arg2, %c0_i32 : i32
    %1 = arith.extui %0 : i1 to i32
    %c0_i32_0 = arith.constant 0 : i32
    %2 = arith.cmpi ne, %1, %c0_i32_0 : i32
    scf.if %2 {
      %cst_15 = arith.constant 0.000000e+00 : f32
      %19 = vector.broadcast %cst_15 : f32 to vector<8x128xf32>
      %c0_16 = arith.constant 0 : index
      %c0_17 = arith.constant 0 : index
      %20 = vector.load %arg6[%c0_16, %c0_17] : memref<8x128xf32, #tpu.memory_space<vmem>>, vector<8x128xf32>
      tpu.vector_store %arg6[%c0_16, %c0_17], %19 {strides = array<i32>} : memref<8x128xf32, #tpu.memory_space<vmem>>, vector<8x128xf32>,
      %cst_18 = arith.constant 0.000000e+00 : f32
      %21 = vector.broadcast %cst_18 : f32 to vector<1x128xf32>
      %c0_19 = arith.constant 0 : index
      %c0_20 = arith.constant 0 : index
      %22 = vector.load %arg7[%c0_19, %c0_20] : memref<1x128xf32, #tpu.memory_space<vmem>>, vector<1x128xf32>
      tpu.vector_store %arg7[%c0_19, %c0_20], %21 {strides = array<i32>} : memref<1x128xf32, #tpu.memory_space<vmem>>, vector<1x128xf32>,
    } else {
    }
    %c0 = arith.constant 0 : index
    %c0_1 = arith.constant 0 : index
    %3 = vector.load %arg5[%c0, %c0_1] : memref<128x128xbf16, #tpu.memory_space<vmem>>, vector<128x128xbf16>
    %4 = arith.extf %3 : vector<128x128xbf16> to vector<128x128xf32>
    %c0_2 = arith.constant 0 : index
    %c0_3 = arith.constant 0 : index
    %5 = vector.load %arg7[%c0_2, %c0_3] : memref<1x128xf32, #tpu.memory_space<vmem>>, vector<1x128xf32>
    %6 = arith.mulf %4, %4 : vector<128x128xf32>
    %cst = arith.constant dense<0.000000e+00> : vector<128xf32>
    %7 = vector.multi_reduction <add>, %6, %cst [0] : vector<128x128xf32> to vector<128xf32>
    %8 = vector.shape_cast %7 : vector<128xf32> to vector<1x128xf32>
    %9 = arith.addf %5, %8 : vector<1x128xf32>
    %c0_4 = arith.constant 0 : index
    %c0_5 = arith.constant 0 : index
    %10 = vector.load %arg7[%c0_4, %c0_5] : memref<1x128xf32, #tpu.memory_space<vmem>>, vector<1x128xf32>
    tpu.vector_store %arg7[%c0_4, %c0_5], %9 {strides = array<i32>} : memref<1x128xf32, #tpu.memory_space<vmem>>, vector<1x128xf32>,
    %c0_6 = arith.constant 0 : index
    %c0_7 = arith.constant 0 : index
    %11 = vector.load %arg6[%c0_6, %c0_7] : memref<8x128xf32, #tpu.memory_space<vmem>>, vector<8x128xf32>
    %c0_8 = arith.constant 0 : index
    %c0_9 = arith.constant 0 : index
    %12 = vector.load %arg4[%c0_8, %c0_9] : memref<8x128xbf16, #tpu.memory_space<vmem>>, vector<8x128xbf16>
    %cst_10 = arith.constant dense<0.000000e+00> : vector<8x128xf32>
    %13 = tpu.matmul %12, %3, %cst_10 {dimension_numbers = #tpu.dot_dimension_numbers<[1], [0], [0], [1], [0, 0, 1, 1], [], []>} : vector<8x128xbf16>, vector<128x128xbf16>, vector<8x128xf32> -> vector<8x128xf32>
    %14 = arith.addf %11, %13 : vector<8x128xf32>
    %c0_11 = arith.constant 0 : index
    %c0_12 = arith.constant 0 : index
    %15 = vector.load %arg6[%c0_11, %c0_12] : memref<8x128xf32, #tpu.memory_space<vmem>>, vector<8x128xf32>
    tpu.vector_store %arg6[%c0_11, %c0_12], %14 {strides = array<i32>} : memref<8x128xf32, #tpu.memory_space<vmem>>, vector<8x128xf32>,
    %c0_i32_13 = arith.constant 0 : i32
    %16 = arith.cmpi eq, %arg2, %c0_i32_13 : i32
    %17 = arith.extui %16 : i1 to i32
    %c0_i32_14 = arith.constant 0 : i32
    %18 = arith.cmpi ne, %17, %c0_i32_14 : i32
    scf.if %18 {
      %c0_15 = arith.constant 0 : index
      %c0_16 = arith.constant 0 : index
      %19 = vector.load %arg7[%c0_15, %c0_16] : memref<1x128xf32, #tpu.memory_space<vmem>>, vector<1x128xf32>
      %cst_17 = arith.constant 1.000000e-24 : f32
      %20 = vector.broadcast %cst_17 : f32 to vector<1x128xf32>
      %21 = arith.maximumf %19, %20 : vector<1x128xf32>
      %22 = math.rsqrt %21 : vector<1x128xf32>
      %c0_18 = arith.constant 0 : index
      %c0_19 = arith.constant 0 : index
      %23 = vector.load %arg6[%c0_18, %c0_19] : memref<8x128xf32, #tpu.memory_space<vmem>>, vector<8x128xf32>
      %c0_20 = arith.constant 0 : index
      %c0_21 = arith.constant 0 : index
      %24 = vector.load %arg3[%c0_20, %c0_21] : memref<8x1xf32, #tpu.memory_space<vmem>>, vector<8x1xf32>
      %25 = vector.broadcast %24 : vector<8x1xf32> to vector<8x128xf32>
      %26 = arith.mulf %23, %25 : vector<8x128xf32>
      %27 = vector.broadcast %22 : vector<1x128xf32> to vector<8x128xf32>
      %28 = arith.mulf %26, %27 : vector<8x128xf32>
      %c0_22 = arith.constant 0 : index
      %c0_23 = arith.constant 0 : index
      %29 = vector.load %arg6[%c0_22, %c0_23] : memref<8x128xf32, #tpu.memory_space<vmem>>, vector<8x128xf32>
      tpu.vector_store %arg6[%c0_22, %c0_23], %28 {strides = array<i32>} : memref<8x128xf32, #tpu.memory_space<vmem>>, vector<8x128xf32>,
    } else {
    }
    return
  }
  func.func @transform_0(%arg0: i32, %arg1: i32, %arg2: i32) -> (i32, i32) {
    %c0_i32 = arith.constant 0 : i32
    %c0_i32_0 = arith.constant 0 : i32
    return %arg0, %c0_i32 : i32, i32
  }
  func.func @transform_1(%arg0: i32, %arg1: i32, %arg2: i32) -> (i32, i32) {
    %c0_i32 = arith.constant 0 : i32
    return %arg0, %arg2 : i32, i32
  }
  func.func @transform_2(%arg0: i32, %arg1: i32, %arg2: i32) -> (i32, i32) {
    %c0_i32 = arith.constant 0 : i32
    return %arg2, %arg1 : i32, i32
  }
  func.func @transform_3(%arg0: i32, %arg1: i32, %arg2: i32) -> (i32, i32) {
    %c0_i32 = arith.constant 0 : i32
    return %arg0, %arg1 : i32, i32
  }
}

</mosaic_0001>

<llo_original>
// kernel: cosine_classifier.1
$region0: #{cosine_classifier.1}
  #allocation0 [shape = 'u32[]', space=smem, size = 0x4, offset = 0x4, fixed_abs, tag = 'smem constant byte address 0x4 - core index']
  #allocation1 [shape = 'u32[144,128]{1,0:T(1,128)}', space=vmem, size = 0x12000, scoped, tag = 'internal scratch']
  #allocation2 [shape = 'f32[1,128]{1,0:T(1,128)}', space=vmem, size = 0x200, scoped, tag = 'scratch operand']
  %s0 = inlined_call_operand.vmem [shape: f32[8,1], index: 0, kind: input, shape index: {}]
  %s1 = inlined_call_operand.vmem [shape: bf16[8,128], index: 1, kind: input, shape index: {}]
  %s2 = inlined_call_operand.vmem [shape: bf16[128,128], index: 2, kind: input, shape index: {}]
  %s3 = inlined_call_operand.hbm [shape: f32[8,128], index: 3, kind: output, shape index: {}]
  %s4 = sld [smem:[#allocation0]]
  $region30: #{cosine_classifier.1} parent=0
    _
  %s6 = ssub.s32 1, %s4
  %s7 = scalar_select 0, %s6, %s4
  $region1: #{cosine_classifier.1} parent=0
    #allocation3 [shape = 'u8[4096]{0}', space=vmem, size = 0x1000, scoped, tag = 'output window, operand 0, single buffered']
    #allocation4 [shape = 's32[1]{0}', space=sflag, size = 0x4, scoped, tag = 'scoped memory for cosine_classifier.1']
    %8 = vsyncpa [#allocation4], 0
    // Predicated region
    $region2: #{cosine_classifier.1} parent=1 // pred_check
      _
    $region3: #{cosine_classifier.1} parent=1 // pred_check_branch
      %10 = sbr.rel (0) target = $region5
    $region4: #{cosine_classifier.1} parent=1 // pred_region
      _
    $region5: #{cosine_classifier.1} parent=1 // pred_fallthru
      _
    // Predicated region
    $region6: #{cosine_classifier.1} parent=1 // pred_check
      _
    $region7: #{cosine_classifier.1} parent=1 // pred_check_branch
      %12 = sbr.rel (0) target = $region9
    $region8: #{cosine_classifier.1} parent=1 // pred_region
      _
    $region9: #{cosine_classifier.1} parent=1 // pred_fallthru
      _
    // Predicated region
    $region10: #{cosine_classifier.1} parent=1 // pred_check
      _
    $region11: #{cosine_classifier.1} parent=1 // pred_check_branch
      %14 = sbr.rel (0) target = $region13
    $region12: #{cosine_classifier.1} parent=1 // pred_region
      _
    $region13: #{cosine_classifier.1} parent=1 // pred_fallthru
      _
    %p16 = scmp.eq.s32.totalorder 0, 0
    // Predicated region
    $region14: #{cosine_classifier.1} parent=1 // pred_check
      %p17 = pneg %p16
    $region15: #{cosine_classifier.1} parent=1 // pred_check_branch
      %19 = sbr.rel (%p17) target = $region17
    $region16: #{cosine_classifier.1} parent=1 // pred_region
      %20 = vst [vmem:[#allocation3] sm:$0xff] 0.0
      %21 = vst [vmem:[#allocation2] sm:$0x1] 0.0
    $region17: #{cosine_classifier.1} parent=1 // pred_fallthru
      _
    %v22 = vld [vmem:[%s2] sm:$0xf]
    %v23 = vld [vmem:[%s2 + $0x4] sm:$0xf]
    %v24 = vld [vmem:[%s2 + $0x8] sm:$0xf]
    %v25 = vld [vmem:[%s2 + $0xc] sm:$0xf]
    %v26 = vld [vmem:[%s2 + $0x10] sm:$0xf]
    %v27 = vld [vmem:[%s2 + $0x14] sm:$0xf]
    %v28 = vld [vmem:[%s2 + $0x18] sm:$0xf]
    %v29 = vld [vmem:[%s2 + $0x1c] sm:$0xf]
    %v30 = vld [vmem:[%s2 + $0x20] sm:$0xf]
    %v31 = vld [vmem:[%s2 + $0x24] sm:$0xf]
    %v32 = vld [vmem:[%s2 + $0x28] sm:$0xf]
    %v33 = vld [vmem:[%s2 + $0x2c] sm:$0xf]
    %v34 = vld [vmem:[%s2 + $0x30] sm:$0xf]
    %v35 = vld [vmem:[%s2 + $0x34] sm:$0xf]
    %v36 = vld [vmem:[%s2 + $0x38] sm:$0xf]
    %v37 = vld [vmem:[%s2 + $0x3c] sm:$0xf]
    %v38 = vunpack.c.l.bf16 %v22
    %v39 = vunpack.c.l.bf16 %v23
    %v40 = vunpack.c.l.bf16 %v24
    %v41 = vunpack.c.l.bf16 %v25
    %v42 = vunpack.c.l.bf16 %v26
    %v43 = vunpack.c.l.bf16 %v27
    %v44 = vunpack.c.l.bf16 %v28
    %v45 = vunpack.c.l.bf16 %v29
    %v46 = vunpack.c.l.bf16 %v30
    %v47 = vunpack.c.l.bf16 %v31
    %v48 = vunpack.c.l.bf16 %v32
    %v49 = vunpack.c.l.bf16 %v33
    %v50 = vunpack.c.l.bf16 %v34
    %v51 = vunpack.c.l.bf16 %v35
    %v52 = vunpack.c.l.bf16 %v36
    %v53 = vunpack.c.l.bf16 %v37
    %v54 = vld [vmem:[#allocation2] sm:$0x1]
    %v55 = vmul.f32 %v38, %v38
    %v56 = vmul.f32 %v39, %v39
    %v57 = vmul.f32 %v40, %v40
    %v58 = vmul.f32 %v41, %v41
    %v59 = vmul.f32 %v42, %v42
    %v60 = vmul.f32 %v43, %v43
    %v61 = vmul.f32 %v44, %v44
    %v62 = vmul.f32 %v45, %v45
    %v63 = vmul.f32 %v46, %v46
    %v64 = vmul.f32 %v47, %v47
    %v65 = vmul.f32 %v48, %v48
    %v66 = vmul.f32 %v49, %v49
    %v67 = vmul.f32 %v50, %v50
    %v68 = vmul.f32 %v51, %v51
    %v69 = vmul.f32 %v52, %v52
    %v70 = vmul.f32 %v53, %v53
    %v71 = vadd.f32 %v55, %v56
    %v72 = vadd.f32 %v71, %v57
    %v73 = vadd.f32 %v72, %v58
    %v74 = vadd.f32 %v73, %v59
    %v75 = vadd.f32 %v74, %v60
    %v76 = vadd.f32 %v75, %v61
    %v77 = vadd.f32 %v76, %v62
    %v78 = vadd.f32 %v77, %v63
    %v79 = vadd.f32 %v78, %v64
    %v80 = vadd.f32 %v79, %v65
    %v81 = vadd.f32 %v80, %v66
    %v82 = vadd.f32 %v81, %v67
    %v83 = vadd.f32 %v82, %v68
    %v84 = vadd.f32 %v83, %v69
    %v85 = vadd.f32 %v84, %v70
    %v86 = vrot.slane %v85, 4
    %v87 = vadd.f32 %v85, %v86
    %v88 = vrot.slane %v87, 2
    %v89 = vadd.f32 %v87, %v88
    %v90 = vrot.slane %v89, 1
    %v91 = vadd.f32 %v89, %v90
    %v92 = vadd.f32 %v54, %v91
    %93 = vst [vmem:[#allocation2] sm:$0x1] %v92
    %v94 = vld [vmem:[#allocation3] sm:$0xff]
    %v95 = vld [vmem:[%s1] sm:$0xf]
    %v112 = vunpack.c.l.b16 %v22
    %v113 = vunpack.c.l.b16 %v23
    %v114 = vunpack.c.l.b16 %v24
    %v115 = vunpack.c.l.b16 %v25
    %v116 = vunpack.c.l.b16 %v26
    %v117 = vunpack.c.l.b16 %v27
    %v118 = vunpack.c.l.b16 %v28
    %v119 = vunpack.c.l.b16 %v29
    %v120 = vunpack.c.l.b16 %v30
    %v121 = vunpack.c.l.b16 %v31
    %v122 = vunpack.c.l.b16 %v32
    %v123 = vunpack.c.l.b16 %v33
    %v124 = vunpack.c.l.b16 %v34
    %v125 = vunpack.c.l.b16 %v35
    %v126 = vunpack.c.l.b16 %v36
    %v127 = vunpack.c.l.b16 %v37
    %v128 = vpack.c.b16 %v113, %v112
    %v129 = vpack.c.b16 %v115, %v114
    %v130 = vpack.c.b16 %v117, %v116
    %v131 = vpack.c.b16 %v119, %v118
    %v132 = vpack.c.b16 %v121, %v120
    %v133 = vpack.c.b16 %v123, %v122
    %v134 = vpack.c.b16 %v125, %v124
    %v135 = vpack.c.b16 %v127, %v126
    %144 = vmatprep.subr.bf16.mxu0 0
    %145 = vmatpush1.bf16.msra.mxu0 %v128
    %146 = vmatprep.subr.bf16.mxu0 0
    %147 = vmatpush1.bf16.msra.mxu0 %v129
    %148 = vmatprep.subr.bf16.mxu0 0
    %149 = vmatpush1.bf16.msra.mxu0 %v130
    %150 = vmatprep.subr.bf16.mxu0 0
    %151 = vmatpush1.bf16.msra.mxu0 %v131
    %152 = vmatprep.subr.bf16.mxu0 0
    %153 = vmatpush1.bf16.msra.mxu0 %v132
    %154 = vmatprep.subr.bf16.mxu0 0
    %155 = vmatpush1.bf16.msra.mxu0 %v133
    %156 = vmatprep.subr.bf16.mxu0 0
    %157 = vmatpush1.bf16.msra.mxu0 %v134
    %158 = vmatprep.subr.bf16.mxu0 0
    %159 = vmatpush1.bf16.msra.mxu0 %v135
    %160 = vmatprep.subr.bf16.mxu0 0
    %161 = vmatpush1.bf16.msra.mxu0 0
    %162 = vmatprep.subr.bf16.mxu0 0
    %163 = vmatpush1.bf16.msra.mxu0 0
    %164 = vmatprep.subr.bf16.mxu0 0
    %165 = vmatpush1.bf16.msra.mxu0 0
    %166 = vmatprep.subr.bf16.mxu0 0
    %167 = vmatpush1.bf16.msra.mxu0 0
    %168 = vmatprep.subr.bf16.mxu0 0
    %169 = vmatpush1.bf16.msra.mxu0 0
    %170 = vmatprep.subr.bf16.mxu0 0
    %171 = vmatpush1.bf16.msra.mxu0 0
    %172 = vmatprep.subr.bf16.mxu0 0
    %173 = vmatpush1.bf16.msra.mxu0 0
    %174 = vmatprep.subr.bf16.mxu0 0
    %175 = vmatpush1.bf16.msra.mxu0 0
    %176 = vmatprep.mubr.bf16.mxu0 0
    %177 = vmatmul.mubr.bf16.gmra.mrb[0].mxu0 %v95
    %v178 = vpop.f32.mrb[0].mxu0
    %v179 = vadd.f32 0.0, %v178
    %v180 = vpop.f32.mrb[0].mxu0
    %v181 = vpop.f32.mrb[0].mxu0
    %v182 = vpop.f32.mrb[0].mxu0
    %183 = vdwg.mxu0
    %v184 = vadd.f32 %v94, %v179
    %185 = vst [vmem:[#allocation3] sm:$0xff] %v184
    // Predicated region
    $region18: #{cosine_classifier.1} parent=1 // pred_check
      %p186 = pneg %p16
    $region19: #{cosine_classifier.1} parent=1 // pred_check_branch
      %188 = sbr.rel (%p186) target = $region21
    $region20: #{cosine_classifier.1} parent=1 // pred_region
      %v189 = vld [vmem:[#allocation2] sm:$0x1]
      %v190 = vmax.f32 %v189, 1e-24
      %v191 = vrsqrt.pop %v190
      %v192 = vld [vmem:[#allocation3] sm:$0xff]
      %v193 = vld [vmem:[%s0] sm:$0xff]
      %195 = vset.pattern.permute.xlu0 0
      %196 = vperm.xlu0 %195, %v193
      %v197 = vpop.permute.xlu0 %196
      %v199 = vmul.f32 %v192, %v197
      %v201 = vlaneseq
      %v202 = vshrl.u32 %v201, 7
      %v203 = vsub.s32 0, %v202
      %v204 = vrot.slane %v191, %v203
      %v206 = vmul.f32 %v199, %v204
      %207 = vst [vmem:[#allocation3] sm:$0xff] %v206
    $region21: #{cosine_classifier.1} parent=1 // pred_fallthru
      _
    // Predicated region
    $region22: #{cosine_classifier.1} parent=1 // pred_check
      _
    $region23: #{cosine_classifier.1} parent=1 // pred_check_branch
      %209 = sbr.rel (0) target = $region25
    $region24: #{cosine_classifier.1} parent=1 // pred_region
      %s211 = ssub.s32 128, 128
      %212 = vsyncadd [#allocation4], %s211
      %s214 = sshll.u32 [#allocation3], 4
      %s215 = int_to_ptr.vmem [resolvable:$true] %s214
      %217 = dma.vmem_to_hbm [thread:$0]  %s215, 128, %s3, [#allocation4]
    $region25: #{cosine_classifier.1} parent=1 // pred_fallthru
      _
    // Predicated region
    $region26: #{cosine_classifier.1} parent=1 // pred_check
      _
    $region27: #{cosine_classifier.1} parent=1 // pred_check_branch
      %219 = sbr.rel (0) target = $region29
    $region28: #{cosine_classifier.1} parent=1 // pred_region
      %220 = dma.done [#allocation4], 128
    $region29: #{cosine_classifier.1} parent=1 // pred_fallthru
      _
    %221 = vsyncpa [#allocation4], 1

</llo_original>
